<compile_context>
chip_gen: v6e
topology: v6e:2x2x1
jax: 0.10.0
libtpu: 0.0.40
codegen_flags: <defaults>
</compile_context>

<pallas_src>
import functools

import jax
import jax.numpy as jnp
from jax.experimental import pallas as pl
from jax.experimental.pallas import tpu as pltpu


def _round_up(v, m):
    return (v + m - 1) // m * m


# ----------------------------------------------------------------------------
# Fused kernel: [patch-proj encoder + to_dist_layer]  ->  reparameterize  ->
#               [to_decoder_input + patch-proj decoder],   two MXU matmuls.
# ----------------------------------------------------------------------------
def _fused_forward_kernel(
    xp_ref,     # (TM, KP)     bf16  patchified input (zero padded features)
    y_ref,      # (TM, CP)     bf16  labels (zero padded lanes)
    eps_ref,    # (TM, SP)     f32   reparameterization noise (zero padded)
    wdist_ref,  # (KP, 2*SP)   bf16  composed enc->to_dist weight [mu | logvar]
    bdist_ref,  # (1, 2*SP)    f32
    wds_ref,    # (SP, OUTP)   bf16  composed to_decoder_input->dec weight (s rows)
    wdy_ref,    # (CP, OUTP)   bf16  composed to_decoder_input->dec weight (y rows)
    bdec_ref,   # (1, OUTP)    f32
    out_ref,    # (TM, OUTP)   f32   reconstruction, per-example patch layout
    slv_ref,    # (TM, 3*SP)   f32   [ s | mu | logvar ] packed, lane-dense
    *,
    sp,
):
    # Encoder + flatten + to_dist_layer folded into one matmul; mu / logvar are
    # two 128-wide column blocks of the same product (shared LHS pushes).
    dist = (
        jnp.dot(xp_ref[...], wdist_ref[...], preferred_element_type=jnp.float32)
        + bdist_ref[...]
    )
    mu = dist[:, :sp]
    lv = dist[:, sp:]

    # cont_reparameterize (training mode), kept in f32 on the VPU/EUP.
    s = eps_ref[...] * jnp.exp(0.5 * lv) + mu

    # z = cat([s, y]); to_decoder_input + decoder patch projection composed:
    #   out = s @ W_s + y @ W_y + b
    dec = (
        jnp.dot(s.astype(wds_ref.dtype), wds_ref[...],
                preferred_element_type=jnp.float32)
        + jnp.dot(y_ref[...], wdy_ref[...], preferred_element_type=jnp.float32)
        + bdec_ref[...]
    )

    out_ref[...] = dec
    # Lane-dense packed store of the three narrow results (one wide slab).
    slv_ref[:, 0:sp] = s
    slv_ref[:, sp:2 * sp] = mu
    slv_ref[:, 2 * sp:3 * sp] = lv


def _fused_forward(xp, y, eps, wdist, bdist, wds, wdy, bdec, *, tm):
    n_pad, kp = xp.shape
    _, cp = y.shape
    _, sp = eps.shape
    outp = wds.shape[1]
    grid = (n_pad // tm,)

    row = lambda i: (i, 0)
    const = lambda i: (0, 0)

    flops = int(2 * n_pad * (kp * 2 * sp + (sp + cp) * outp))
    bytes_accessed = int(
        sum(a.size * a.dtype.itemsize for a in (xp, y, eps, wdist, bdist, wds, wdy, bdec))
        + n_pad * outp * 4 + n_pad * 3 * sp * 4
    )

    return pl.pallas_call(
        functools.partial(_fused_forward_kernel, sp=sp),
        out_shape=(
            jax.ShapeDtypeStruct((n_pad, outp), jnp.float32),
            jax.ShapeDtypeStruct((n_pad, 3 * sp), jnp.float32),
        ),
        grid_spec=pltpu.PrefetchScalarGridSpec(
            num_scalar_prefetch=0,
            grid=grid,
            in_specs=[
                pl.BlockSpec((tm, kp), row),        # patchified x
                pl.BlockSpec((tm, cp), row),        # y
                pl.BlockSpec((tm, sp), row),        # eps
                pl.BlockSpec((kp, 2 * sp), const),  # composed dist weight (VMEM-resident)
                pl.BlockSpec((1, 2 * sp), const),
                pl.BlockSpec((sp, outp), const),
                pl.BlockSpec((cp, outp), const),
                pl.BlockSpec((1, outp), const),
            ],
            out_specs=(
                pl.BlockSpec((tm, outp), row),
                pl.BlockSpec((tm, 3 * sp), row),
            ),
        ),
        compiler_params=pltpu.CompilerParams(
            dimension_semantics=("parallel",),
        ),
        cost_estimate=pl.CostEstimate(
            flops=flops,
            transcendentals=int(n_pad * sp),
            bytes_accessed=bytes_accessed,
        ),
    )(xp, y, eps, wdist, bdist, wds, wdy, bdec)


# ----------------------------------------------------------------------------
# Module wrapper
# ----------------------------------------------------------------------------
class ViewSpecificAEPallas:
    def __init__(
        self,
        *,
        channels=1,
        height=16,
        width=16,
        latent_ch=10,
        block_size=8,
        s_dim=15,
        c_dim=10,
        key=jax.random.PRNGKey(42),
        mxu_dtype=jnp.bfloat16,
    ):
        assert height % block_size == 0 and width % block_size == 0
        self.C, self.H, self.W = channels, height, width
        self.latent_ch = latent_ch
        self.block_size = block_size
        self.s_dim = s_dim
        self.c_dim = c_dim
        self.mxu_dtype = mxu_dtype
        self.p = height // block_size                 # patch size of stand-in enc/dec
        pf = channels * self.p * self.p               # features per patch
        flat_dim = latent_ch * block_size * block_size
        bbpf = block_size * block_size * pf           # per-example patchified width
        self.pf, self.flat_dim, self.bbpf = pf, flat_dim, bbpf

        f32 = jnp.float32
        std_w, std_b = 0.02, 0.01
        ks = jax.random.split(key, 8)
        # --- raw (un-composed) parameters; kept for the pure-JAX reference ----
        self.w_enc = std_w * jax.random.normal(ks[0], (pf, latent_ch), f32)
        self.b_enc = std_b * jax.random.normal(ks[1], (latent_ch,), f32)
        self.w_decp = std_w * jax.random.normal(ks[2], (latent_ch, pf), f32)
        self.b_decp = std_b * jax.random.normal(ks[3], (pf,), f32)
        # to_dist_layer : flat_dim -> 2*s_dim
        self.w_dist = std_w * jax.random.normal(ks[4], (flat_dim, 2 * s_dim), f32)
        self.b_dist = std_b * jax.random.normal(ks[5], (2 * s_dim,), f32)
        # to_decoder_input : (s_dim + c_dim) -> flat_dim
        self.w_dec = std_w * jax.random.normal(ks[6], (s_dim + c_dim, flat_dim), f32)
        self.b_dec = std_b * jax.random.normal(ks[7], (flat_dim,), f32)

        # --- compose the linear patch projections into the latent layers (exact) ---
        b = block_size
        eye_bb = jnp.eye(b * b, dtype=f32)
        # encoder + torch.flatten as one matrix: rows (patch p, feat f) -> cols (latent l, patch q)
        W_L = jnp.einsum('fl,pq->pflq', self.w_enc, eye_bb).reshape(bbpf, flat_dim)
        b_L = jnp.repeat(self.b_enc, b * b)                  # index l*b*b+q -> b_enc[l]
        w_enc_dist = W_L @ self.w_dist                       # (bbpf, 2*s_dim)
        b_enc_dist = b_L @ self.w_dist + self.b_dist         # (2*s_dim,)

        # view(-1,lc,b,b) + decoder patch projection as one matrix:
        #   rows (latent l, patch p) -> cols (patch r, pixel-feature q)
        W_R = jnp.einsum('lq,pr->lprq', self.w_decp, eye_bb).reshape(flat_dim, bbpf)
        b_R = jnp.tile(self.b_decp, b * b)                   # index r*pf+q -> b_decp[q]
        w_dec_full = self.w_dec @ W_R                        # (s_dim+c_dim, bbpf)
        b_dec_full = self.b_dec @ W_R + b_R                  # (bbpf,)

        # --- pad to lane-dense 128-multiples; cast MXU operands to bf16 -------
        KP = _round_up(bbpf, 128)
        SP = _round_up(s_dim, 128)
        CP = _round_up(c_dim, 128)
        OUTP = _round_up(bbpf, 128)
        self.KP, self.SP, self.CP, self.OUTP = KP, SP, CP, OUTP

        wdist_p = jnp.zeros((KP, 2 * SP), f32)
        wdist_p = wdist_p.at[:bbpf, :s_dim].set(w_enc_dist[:, :s_dim])
        wdist_p = wdist_p.at[:bbpf, SP:SP + s_dim].set(w_enc_dist[:, s_dim:])
        bdist_p = jnp.zeros((1, 2 * SP), f32)
        bdist_p = bdist_p.at[0, :s_dim].set(b_enc_dist[:s_dim])
        bdist_p = bdist_p.at[0, SP:SP + s_dim].set(b_enc_dist[s_dim:])
        wds_p = jnp.zeros((SP, OUTP), f32).at[:s_dim, :bbpf].set(w_dec_full[:s_dim])
        wdy_p = jnp.zeros((CP, OUTP), f32).at[:c_dim, :bbpf].set(w_dec_full[s_dim:])
        bdec_p = jnp.zeros((1, OUTP), f32).at[0, :bbpf].set(b_dec_full)

        self.wdist = wdist_p.astype(mxu_dtype)
        self.bdist = bdist_p
        self.wds = wds_p.astype(mxu_dtype)
        self.wdy = wdy_p.astype(mxu_dtype)
        self.bdec = bdec_p

    # (N, C, H, W) -> (N, b*b*C*p*p)   im2col for the kernel==stride projection
    def _to_patches(self, x):
        n = x.shape[0]
        b, p, c = self.block_size, self.p, self.C
        x = x.reshape(n, c, b, p, b, p)
        x = jnp.transpose(x, (0, 2, 4, 1, 3, 5))      # N, bh, bw, C, ph, pw
        return x.reshape(n, b * b * c * p * p)

    # (N, b*b*C*p*p) -> (N, C, H, W)
    def _from_patches(self, xp, n):
        b, p, c = self.block_size, self.p, self.C
        x = xp.reshape(n, b, b, c, p, p)
        x = jnp.transpose(x, (0, 3, 1, 4, 2, 5))      # N, C, bh, ph, bw, pw
        return x.reshape(n, c, self.H, self.W)

    def forward(self, x, y, eps):
        """Matches ViewSpecificAE.forward(x, y) in training mode; the
        reparameterization noise `eps` is supplied explicitly for determinism.
        Returns (reconstruction, s, mu, logvar)."""
        n = x.shape[0]
        SP, CP, KP = self.SP, self.CP, self.KP

        # Row tiling: pad rows to a bf16-friendly multiple; 256-row tiles when large.
        n_pad = _round_up(n, 16)
        if n_pad > 256:
            n_pad = _round_up(n, 256)
            tm = 256
        else:
            tm = n_pad

        xp = self._to_patches(x)
        xp_p = jnp.zeros((n_pad, KP), jnp.float32).at[:n, :self.bbpf].set(xp)
        y_p = jnp.zeros((n_pad, CP), jnp.float32).at[:n, :self.c_dim].set(y)
        eps_p = jnp.zeros((n_pad, SP), jnp.float32).at[:n, :self.s_dim].set(eps)

        out_p, slv = _fused_forward(
            xp_p.astype(self.mxu_dtype), y_p.astype(self.mxu_dtype), eps_p,
            self.wdist, self.bdist, self.wds, self.wdy, self.bdec, tm=tm)

        recon = self._from_patches(out_p[:n, :self.bbpf], n)
        s = slv[:n, :self.s_dim]
        mu = slv[:n, SP:SP + self.s_dim]
        logvar = slv[:n, 2 * SP:2 * SP + self.s_dim]
        return recon, s, mu, logvar

    # Pure-JAX f32 reference following the original (un-composed) structure.
    def reference_forward(self, x, y, eps):
        n = x.shape[0]
        b, lc = self.block_size, self.latent_ch
        patches = self._to_patches(x).reshape(n * b * b, -1)
        lat = patches @ self.w_enc + self.b_enc                    # stand-in encoder
        lat = lat.reshape(n, b, b, lc).transpose(0, 3, 1, 2).reshape(n, -1)
        z = lat @ self.w_dist + self.b_dist                        # to_dist_layer
        mu, lv = z[:, :self.s_dim], z[:, self.s_dim:]
        s = eps * jnp.exp(0.5 * lv) + mu                           # reparameterize
        zc = jnp.concatenate([s, y], axis=1)
        dec_in = zc @ self.w_dec + self.b_dec                      # to_decoder_input
        dec = dec_in.reshape(n, lc, b, b).transpose(0, 2, 3, 1).reshape(n * b * b, lc)
        out_p = dec @ self.w_decp + self.b_decp                    # stand-in decoder
        recon = self._from_patches(out_p.reshape(n, -1), n)
        return recon, s, mu, lv


# ----------------------------------------------------------------------------
# Main
# ----------------------------------------------------------------------------
if __name__ == "__main__":
    key = jax.random.PRNGKey(0)
    kx, ky, ke, kw = jax.random.split(key, 4)

    N, C, H, W = 2, 1, 16, 16
    s_dim, c_dim = 15, 10

    model = ViewSpecificAEPallas(
        channels=C, height=H, width=W,
        latent_ch=10, block_size=8, s_dim=s_dim, c_dim=c_dim, key=kw,
    )

    x = jax.random.normal(kx, (N, C, H, W), jnp.float32)
    y = jax.random.normal(ky, (N, c_dim), jnp.float32)
    eps = jax.random.normal(ke, (N, s_dim), jnp.float32)

    out, s, mu, logvar = model.forward(x, y, eps)
    jax.block_until_ready((out, s, mu, logvar))

    assert out.shape == (N, C, H, W)
    assert s.shape == (N, s_dim)
    assert mu.shape == (N, s_dim)
    assert logvar.shape == (N, s_dim)

    # Correctness vs. pure-JAX f32 reference (tolerance covers bf16 MXU inputs).
    r_out, r_s, r_mu, r_lv = model.reference_forward(x, y, eps)
    for got, ref in ((out, r_out), (s, r_s), (mu, r_mu), (logvar, r_lv)):
        err = float(jnp.max(jnp.abs(got - ref)))
        assert jnp.allclose(got, ref, rtol=5e-2, atol=5e-3), f"max abs err {err}"

    print("KERNEL_OK")
</pallas_src>

<mosaic_0001>
module attributes {stable_mosaic.version = 11 : i64} {
  func.func @_fused_forward_kernel(%arg0: i32, %arg1: memref<16x256xbf16, #tpu.memory_space<vmem>>, %arg2: memref<16x128xbf16, #tpu.memory_space<vmem>>, %arg3: memref<16x128xf32, #tpu.memory_space<vmem>>, %arg4: memref<256x256xbf16, #tpu.memory_space<vmem>>, %arg5: memref<1x256xf32, #tpu.memory_space<vmem>>, %arg6: memref<128x256xbf16, #tpu.memory_space<vmem>>, %arg7: memref<128x256xbf16, #tpu.memory_space<vmem>>, %arg8: memref<1x256xf32, #tpu.memory_space<vmem>>, %arg9: memref<16x256xf32, #tpu.memory_space<vmem>>, %arg10: memref<16x384xf32, #tpu.memory_space<vmem>>) attributes {dimension_semantics = [#tpu.dimension_semantics<parallel>], iteration_bounds = array<i64: 1>, scalar_prefetch = 0 : i64, scratch_operands = 0 : i64, tpu.core_type = #tpu.core_type<tc>, window_params = [{transform_indices = @transform_0, window_bounds = array<i64: 16, 256>}, {transform_indices = @transform_1, window_bounds = array<i64: 16, 128>}, {transform_indices = @transform_2, window_bounds = array<i64: 16, 128>}, {pipeline_mode = #tpu.pipeline_mode<synchronous>, transform_indices = @transform_3, window_bounds = array<i64: 256, 256>}, {pipeline_mode = #tpu.pipeline_mode<synchronous>, transform_indices = @transform_4, window_bounds = array<i64: 1, 256>}, {pipeline_mode = #tpu.pipeline_mode<synchronous>, transform_indices = @transform_5, window_bounds = array<i64: 128, 256>}, {pipeline_mode = #tpu.pipeline_mode<synchronous>, transform_indices = @transform_6, window_bounds = array<i64: 128, 256>}, {pipeline_mode = #tpu.pipeline_mode<synchronous>, transform_indices = @transform_7, window_bounds = array<i64: 1, 256>}, {transform_indices = @transform_8, window_bounds = array<i64: 16, 256>}, {transform_indices = @transform_9, window_bounds = array<i64: 16, 384>}]} {
    %c0 = arith.constant 0 : index
    %c0_0 = arith.constant 0 : index
    %0 = vector.load %arg1[%c0, %c0_0] : memref<16x256xbf16, #tpu.memory_space<vmem>>, vector<16x256xbf16>
    %c0_1 = arith.constant 0 : index
    %c0_2 = arith.constant 0 : index
    %1 = vector.load %arg4[%c0_1, %c0_2] : memref<256x256xbf16, #tpu.memory_space<vmem>>, vector<256x256xbf16>
    %cst = arith.constant dense<0.000000e+00> : vector<16x256xf32>
    %2 = tpu.matmul %0, %1, %cst {dimension_numbers = #tpu.dot_dimension_numbers<[1], [0], [0], [1], [0, 0, 1, 1], [], []>} : vector<16x256xbf16>, vector<256x256xbf16>, vector<16x256xf32> -> vector<16x256xf32>
    %c0_3 = arith.constant 0 : index
    %c0_4 = arith.constant 0 : index
    %3 = vector.load %arg5[%c0_3, %c0_4] : memref<1x256xf32, #tpu.memory_space<vmem>>, vector<1x256xf32>
    %4 = vector.broadcast %3 : vector<1x256xf32> to vector<16x256xf32>
    %5 = arith.addf %2, %4 : vector<16x256xf32>
    %6 = vector.extract_strided_slice %5 {offsets = [0, 0], sizes = [16, 128], strides = [1, 1]} : vector<16x256xf32> to vector<16x128xf32>
    %7 = vector.extract_strided_slice %5 {offsets = [0, 128], sizes = [16, 128], strides = [1, 1]} : vector<16x256xf32> to vector<16x128xf32>
    %c0_5 = arith.constant 0 : index
    %c0_6 = arith.constant 0 : index
    %8 = vector.load %arg3[%c0_5, %c0_6] : memref<16x128xf32, #tpu.memory_space<vmem>>, vector<16x128xf32>
    %cst_7 = arith.constant 5.000000e-01 : f32
    %9 = vector.broadcast %cst_7 : f32 to vector<16x128xf32>
    %10 = arith.mulf %9, %7 : vector<16x128xf32>
    %11 = math.exp %10 : vector<16x128xf32>
    %12 = arith.mulf %8, %11 : vector<16x128xf32>
    %13 = arith.addf %12, %6 : vector<16x128xf32>
    %14 = arith.truncf %13 : vector<16x128xf32> to vector<16x128xbf16>
    %c0_8 = arith.constant 0 : index
    %c0_9 = arith.constant 0 : index
    %15 = vector.load %arg6[%c0_8, %c0_9] : memref<128x256xbf16, #tpu.memory_space<vmem>>, vector<128x256xbf16>
    %cst_10 = arith.constant dense<0.000000e+00> : vector<16x256xf32>
    %16 = tpu.matmul %14, %15, %cst_10 {dimension_numbers = #tpu.dot_dimension_numbers<[1], [0], [0], [1], [0, 0, 1, 1], [], []>} : vector<16x128xbf16>, vector<128x256xbf16>, vector<16x256xf32> -> vector<16x256xf32>
    %c0_11 = arith.constant 0 : index
    %c0_12 = arith.constant 0 : index
    %17 = vector.load %arg2[%c0_11, %c0_12] : memref<16x128xbf16, #tpu.memory_space<vmem>>, vector<16x128xbf16>
    %c0_13 = arith.constant 0 : index
    %c0_14 = arith.constant 0 : index
    %18 = vector.load %arg7[%c0_13, %c0_14] : memref<128x256xbf16, #tpu.memory_space<vmem>>, vector<128x256xbf16>
    %cst_15 = arith.constant dense<0.000000e+00> : vector<16x256xf32>
    %19 = tpu.matmul %17, %18, %cst_15 {dimension_numbers = #tpu.dot_dimension_numbers<[1], [0], [0], [1], [0, 0, 1, 1], [], []>} : vector<16x128xbf16>, vector<128x256xbf16>, vector<16x256xf32> -> vector<16x256xf32>
    %20 = arith.addf %16, %19 : vector<16x256xf32>
    %c0_16 = arith.constant 0 : index
    %c0_17 = arith.constant 0 : index
    %21 = vector.load %arg8[%c0_16, %c0_17] : memref<1x256xf32, #tpu.memory_space<vmem>>, vector<1x256xf32>
    %22 = vector.broadcast %21 : vector<1x256xf32> to vector<16x256xf32>
    %23 = arith.addf %20, %22 : vector<16x256xf32>
    %c0_18 = arith.constant 0 : index
    %c0_19 = arith.constant 0 : index
    %24 = vector.load %arg9[%c0_18, %c0_19] : memref<16x256xf32, #tpu.memory_space<vmem>>, vector<16x256xf32>
    tpu.vector_store %arg9[%c0_18, %c0_19], %23 {strides = array<i32>} : memref<16x256xf32, #tpu.memory_space<vmem>>, vector<16x256xf32>,
    %c0_20 = arith.constant 0 : index
    %c0_21 = arith.constant 0 : index
    %25 = vector.load %arg10[%c0_20, %c0_21] : memref<16x384xf32, #tpu.memory_space<vmem>>, vector<16x128xf32>
    tpu.vector_store %arg10[%c0_20, %c0_21], %13 {strides = array<i32>} : memref<16x384xf32, #tpu.memory_space<vmem>>, vector<16x128xf32>,
    %c0_22 = arith.constant 0 : index
    %c128 = arith.constant 128 : index
    %26 = vector.load %arg10[%c0_22, %c128] : memref<16x384xf32, #tpu.memory_space<vmem>>, vector<16x128xf32>
    tpu.vector_store %arg10[%c0_22, %c128], %6 {strides = array<i32>} : memref<16x384xf32, #tpu.memory_space<vmem>>, vector<16x128xf32>,
    %c0_23 = arith.constant 0 : index
    %c256 = arith.constant 256 : index
    %27 = vector.load %arg10[%c0_23, %c256] : memref<16x384xf32, #tpu.memory_space<vmem>>, vector<16x128xf32>
    tpu.vector_store %arg10[%c0_23, %c256], %7 {strides = array<i32>} : memref<16x384xf32, #tpu.memory_space<vmem>>, vector<16x128xf32>,
    return
  }
  func.func @transform_0(%arg0: i32) -> (i32, i32) {
    %c0_i32 = arith.constant 0 : i32
    %c0_i32_0 = arith.constant 0 : i32
    return %arg0, %c0_i32 : i32, i32
  }
  func.func @transform_1(%arg0: i32) -> (i32, i32) {
    %c0_i32 = arith.constant 0 : i32
    %c0_i32_0 = arith.constant 0 : i32
    return %arg0, %c0_i32 : i32, i32
  }
  func.func @transform_2(%arg0: i32) -> (i32, i32) {
    %c0_i32 = arith.constant 0 : i32
    %c0_i32_0 = arith.constant 0 : i32
    return %arg0, %c0_i32 : i32, i32
  }
  func.func @transform_3(%arg0: i32) -> (i32, i32) {
    %c0_i32 = arith.constant 0 : i32
    %c0_i32_0 = arith.constant 0 : i32
    %c0_i32_1 = arith.constant 0 : i32
    return %c0_i32, %c0_i32_0 : i32, i32
  }
  func.func @transform_4(%arg0: i32) -> (i32, i32) {
    %c0_i32 = arith.constant 0 : i32
    %c0_i32_0 = arith.constant 0 : i32
    %c0_i32_1 = arith.constant 0 : i32
    return %c0_i32, %c0_i32_0 : i32, i32
  }
  func.func @transform_5(%arg0: i32) -> (i32, i32) {
    %c0_i32 = arith.constant 0 : i32
    %c0_i32_0 = arith.constant 0 : i32
    %c0_i32_1 = arith.constant 0 : i32
    return %c0_i32, %c0_i32_0 : i32, i32
  }
  func.func @transform_6(%arg0: i32) -> (i32, i32) {
    %c0_i32 = arith.constant 0 : i32
    %c0_i32_0 = arith.constant 0 : i32
    %c0_i32_1 = arith.constant 0 : i32
    return %c0_i32, %c0_i32_0 : i32, i32
  }
  func.func @transform_7(%arg0: i32) -> (i32, i32) {
    %c0_i32 = arith.constant 0 : i32
    %c0_i32_0 = arith.constant 0 : i32
    %c0_i32_1 = arith.constant 0 : i32
    return %c0_i32, %c0_i32_0 : i32, i32
  }
  func.func @transform_8(%arg0: i32) -> (i32, i32) {
    %c0_i32 = arith.constant 0 : i32
    %c0_i32_0 = arith.constant 0 : i32
    return %arg0, %c0_i32 : i32, i32
  }
  func.func @transform_9(%arg0: i32) -> (i32, i32) {
    %c0_i32 = arith.constant 0 : i32
    %c0_i32_0 = arith.constant 0 : i32
    return %arg0, %c0_i32 : i32, i32
  }
}

</mosaic_0001>

<llo_original>
// kernel: tpu_custom_call.1
$region0: #{tpu_custom_call.1}
  #allocation0 [shape = 'u32[]', space=smem, size = 0x4, offset = 0x4, fixed_abs, tag = 'smem constant byte address 0x4 - core index']
  #allocation1 [shape = 'u32[144,128]{1,0:T(1,128)}', space=vmem, size = 0x12000, scoped, tag = 'internal scratch']
  %s0 = inlined_call_operand.hbm [shape: bf16[16,256], index: 0, kind: input, shape index: {}]
  %s1 = inlined_call_operand.hbm [shape: bf16[16,128], index: 1, kind: input, shape index: {}]
  %s2 = inlined_call_operand.hbm [shape: f32[16,128], index: 2, kind: input, shape index: {}]
  %s3 = inlined_call_operand.hbm [shape: bf16[256,256], index: 3, kind: input, shape index: {}]
  %s4 = inlined_call_operand.vmem [shape: f32[1,256], index: 4, kind: input, shape index: {}]
  %s5 = inlined_call_operand.hbm [shape: bf16[128,256], index: 5, kind: input, shape index: {}]
  %s6 = inlined_call_operand.hbm [shape: bf16[128,256], index: 6, kind: input, shape index: {}]
  %s7 = inlined_call_operand.vmem [shape: f32[1,256], index: 7, kind: input, shape index: {}]
  %s8 = inlined_call_operand.hbm [shape: f32[16,256], index: 8, kind: output, shape index: {0}]
  %s9 = inlined_call_operand.hbm [shape: f32[16,384], index: 9, kind: output, shape index: {1}]
  %10 = xla_tuple %s8, %s9
  %s11 = sld [smem:[#allocation0]]
  $region74: #{tpu_custom_call.1} parent=0
    _
  %s13 = ssub.s32 1, %s11
  %s14 = scalar_select 0, %s13, %s11
  $region1: #{tpu_custom_call.1} parent=0
    #allocation2 [shape = 'u8[8192]{0}', space=vmem, size = 0x2000, scoped, tag = 'input window, operand 0, single buffered']
    #allocation3 [shape = 's32[1]{0}', space=sflag, size = 0x4, scoped, tag = 'scoped memory for tpu_custom_call.1']
    #allocation4 [shape = 's32[1]{0}', space=sflag, size = 0x4, scoped, tag = 'scoped memory for tpu_custom_call.1']
    #allocation5 [shape = 'u8[4096]{0}', space=vmem, size = 0x1000, scoped, tag = 'input window, operand 1, single buffered']
    #allocation6 [shape = 's32[1]{0}', space=sflag, size = 0x4, scoped, tag = 'scoped memory for tpu_custom_call.1']
    #allocation7 [shape = 'u8[8192]{0}', space=vmem, size = 0x2000, scoped, tag = 'input window, operand 2, single buffered']
    #allocation8 [shape = 'u8[131072]{0}', space=vmem, size = 0x20000, scoped, tag = 'input window, operand 3, single buffered']
    #allocation9 [shape = 's32[1]{0}', space=sflag, size = 0x4, scoped, tag = 'scoped memory for tpu_custom_call.1']
    #allocation10 [shape = 'u8[65536]{0}', space=vmem, size = 0x10000, scoped, tag = 'input window, operand 5, single buffered']
    #allocation11 [shape = 'u8[65536]{0}', space=vmem, size = 0x10000, scoped, tag = 'input window, operand 6, single buffered']
    #allocation12 [shape = 's32[1]{0}', space=sflag, size = 0x4, scoped, tag = 'scoped memory for tpu_custom_call.1']
    #allocation13 [shape = 'u8[16384]{0}', space=vmem, size = 0x4000, scoped, tag = 'output window, operand 0, single buffered']
    #allocation14 [shape = 'u8[24576]{0}', space=vmem, size = 0x6000, scoped, tag = 'output window, operand 1, single buffered']
    #allocation15 [shape = 's32[1]{0}', space=sflag, size = 0x4, scoped, tag = 'scoped memory for tpu_custom_call.1']
    %15 = vsyncpa [#allocation3], 0
    %16 = vsyncpa [#allocation6], 0
    %17 = vsyncpa [#allocation9], 0
    %18 = vsyncpa [#allocation12], 0
    %19 = vsyncpa [#allocation4], 0
    %20 = vsyncpa [#allocation15], 0
    // Predicated region
    $region2: #{tpu_custom_call.1} parent=1 // pred_check
      _
    $region3: #{tpu_custom_call.1} parent=1 // pred_check_branch
      %22 = sbr.rel (0) target = $region5
    $region4: #{tpu_custom_call.1} parent=1 // pred_region
      %s24 = ssub.s32 256, 256
      %25 = vsyncadd [#allocation3], %s24
      %s26 = sshll.u32 [#allocation2], 4
      %s27 = int_to_ptr.vmem [resolvable:$true] %s26
      %32 = dma.hbm_to_vmem [thread:$0]  %s0, 256, %s27, [#allocation3], 128, 128, 8
    $region5: #{tpu_custom_call.1} parent=1 // pred_fallthru
      _
    // Predicated region
    $region6: #{tpu_custom_call.1} parent=1 // pred_check
      _
    $region7: #{tpu_custom_call.1} parent=1 // pred_check_branch
      %34 = sbr.rel (0) target = $region9
    $region8: #{tpu_custom_call.1} parent=1 // pred_region
      %s36 = ssub.s32 128, 128
      %37 = vsyncadd [#allocation6], %s36
      %s38 = sshll.u32 [#allocation5], 4
      %s39 = int_to_ptr.vmem [resolvable:$true] %s38
      %44 = dma.hbm_to_vmem [thread:$0]  %s1, 128, %s39, [#allocation6], 64, 64, 4
    $region9: #{tpu_custom_call.1} parent=1 // pred_fallthru
      _
    // Predicated region
    $region10: #{tpu_custom_call.1} parent=1 // pred_check
      _
    $region11: #{tpu_custom_call.1} parent=1 // pred_check_branch
      %46 = sbr.rel (0) target = $region13
    $region12: #{tpu_custom_call.1} parent=1 // pred_region
      %s48 = ssub.s32 256, 256
      %49 = vsyncadd [#allocation6], %s48
      %s50 = sshll.u32 [#allocation7], 4
      %s51 = int_to_ptr.vmem [resolvable:$true] %s50
      %56 = dma.hbm_to_vmem [thread:$0]  %s2, 256, %s51, [#allocation6], 128, 128, 8
    $region13: #{tpu_custom_call.1} parent=1 // pred_fallthru
      _
    // Predicated region
    $region14: #{tpu_custom_call.1} parent=1 // pred_check
      _
    $region15: #{tpu_custom_call.1} parent=1 // pred_check_branch
      %58 = sbr.rel (0) target = $region17
    $region16: #{tpu_custom_call.1} parent=1 // pred_region
      %s60 = ssub.s32 4096, 4096
      %61 = vsyncadd [#allocation9], %s60
      %s62 = sshll.u32 [#allocation8], 4
      %s63 = int_to_ptr.vmem [resolvable:$true] %s62
      %68 = dma.hbm_to_vmem [thread:$0]  %s3, 4096, %s63, [#allocation9], 128, 128, 8
    $region17: #{tpu_custom_call.1} parent=1 // pred_fallthru
      _
    // Predicated region
    $region18: #{tpu_custom_call.1} parent=1 // pred_check
      _
    $region19: #{tpu_custom_call.1} parent=1 // pred_check_branch
      %70 = sbr.rel (0) target = $region21
    $region20: #{tpu_custom_call.1} parent=1 // pred_region
      _
    $region21: #{tpu_custom_call.1} parent=1 // pred_fallthru
      _
    // Predicated region
    $region22: #{tpu_custom_call.1} parent=1 // pred_check
      _
    $region23: #{tpu_custom_call.1} parent=1 // pred_check_branch
      %72 = sbr.rel (0) target = $region25
    $region24: #{tpu_custom_call.1} parent=1 // pred_region
      %s74 = ssub.s32 2048, 2048
      %75 = vsyncadd [#allocation9], %s74
      %s76 = sshll.u32 [#allocation10], 4
      %s77 = int_to_ptr.vmem [resolvable:$true] %s76
      %82 = dma.hbm_to_vmem [thread:$0]  %s5, 2048, %s77, [#allocation9], 128, 128, 8
    $region25: #{tpu_custom_call.1} parent=1 // pred_fallthru
      _
    // Predicated region
    $region26: #{tpu_custom_call.1} parent=1 // pred_check
      _
    $region27: #{tpu_custom_call.1} parent=1 // pred_check_branch
      %84 = sbr.rel (0) target = $region29
    $region28: #{tpu_custom_call.1} parent=1 // pred_region
      %s86 = ssub.s32 2048, 2048
      %87 = vsyncadd [#allocation12], %s86
      %s88 = sshll.u32 [#allocation11], 4
      %s89 = int_to_ptr.vmem [resolvable:$true] %s88
      %94 = dma.hbm_to_vmem [thread:$0]  %s6, 2048, %s89, [#allocation12], 128, 128, 8
    $region29: #{tpu_custom_call.1} parent=1 // pred_fallthru
      _
    // Predicated region
    $region30: #{tpu_custom_call.1} parent=1 // pred_check
      _
    $region31: #{tpu_custom_call.1} parent=1 // pred_check_branch
      %96 = sbr.rel (0) target = $region33
    $region32: #{tpu_custom_call.1} parent=1 // pred_region
      _
    $region33: #{tpu_custom_call.1} parent=1 // pred_fallthru
      _
    // Predicated region
    $region34: #{tpu_custom_call.1} parent=1 // pred_check
      _
    $region35: #{tpu_custom_call.1} parent=1 // pred_check_branch
      %98 = sbr.rel (0) target = $region37
    $region36: #{tpu_custom_call.1} parent=1 // pred_region
      %99 = dma.done [#allocation3], 256
    $region37: #{tpu_custom_call.1} parent=1 // pred_fallthru
      _
    // Predicated region
    $region38: #{tpu_custom_call.1} parent=1 // pred_check
      _
    $region39: #{tpu_custom_call.1} parent=1 // pred_check_branch
      %101 = sbr.rel (0) target = $region41
    $region40: #{tpu_custom_call.1} parent=1 // pred_region
      %102 = dma.done [#allocation6], 128
    $region41: #{tpu_custom_call.1} parent=1 // pred_fallthru
      _
    // Predicated region
    $region42: #{tpu_custom_call.1} parent=1 // pred_check
      _
    $region43: #{tpu_custom_call.1} parent=1 // pred_check_branch
      %104 = sbr.rel (0) target = $region45
    $region44: #{tpu_custom_call.1} parent=1 // pred_region
      %105 = dma.done [#allocation6], 256
    $region45: #{tpu_custom_call.1} parent=1 // pred_fallthru
      _
    // Predicated region
    $region46: #{tpu_custom_call.1} parent=1 // pred_check
      _
    $region47: #{tpu_custom_call.1} parent=1 // pred_check_branch
      %107 = sbr.rel (0) target = $region49
    $region48: #{tpu_custom_call.1} parent=1 // pred_region
      %108 = dma.done [#allocation9], 4096
    $region49: #{tpu_custom_call.1} parent=1 // pred_fallthru
      _
    // Predicated region
    $region50: #{tpu_custom_call.1} parent=1 // pred_check
      _
    $region51: #{tpu_custom_call.1} parent=1 // pred_check_branch
      %110 = sbr.rel (0) target = $region53
    $region52: #{tpu_custom_call.1} parent=1 // pred_region
      %111 = dma.done [#allocation9], 2048
    $region53: #{tpu_custom_call.1} parent=1 // pred_fallthru
      _
    // Predicated region
    $region54: #{tpu_custom_call.1} parent=1 // pred_check
      _
    $region55: #{tpu_custom_call.1} parent=1 // pred_check_branch
      %113 = sbr.rel (0) target = $region57
    $region56: #{tpu_custom_call.1} parent=1 // pred_region
      %114 = dma.done [#allocation12], 2048
    $region57: #{tpu_custom_call.1} parent=1 // pred_fallthru
      _
    %v116 = vld [vmem:[#allocation2] sm:$0xff]
    %v117 = vld [vmem:[#allocation2 + $0x8] sm:$0xff]
    %v118 = vld [vmem:[#allocation8] sm:$0xff]
    %v119 = vld [vmem:[#allocation8 + $0x8] sm:$0xff]
    %v120 = vld [vmem:[#allocation8 + $0x10] sm:$0xff]
    %v121 = vld [vmem:[#allocation8 + $0x18] sm:$0xff]
    %v122 = vld [vmem:[#allocation8 + $0x20] sm:$0xff]
    %v123 = vld [vmem:[#allocation8 + $0x28] sm:$0xff]
    %v124 = vld [vmem:[#allocation8 + $0x30] sm:$0xff]
    %v125 = vld [vmem:[#allocation8 + $0x38] sm:$0xff]
    %v126 = vld [vmem:[#allocation8 + $0x40] sm:$0xff]
    %v127 = vld [vmem:[#allocation8 + $0x48] sm:$0xff]
    %v128 = vld [vmem:[#allocation8 + $0x50] sm:$0xff]
    %v129 = vld [vmem:[#allocation8 + $0x58] sm:$0xff]
    %v130 = vld [vmem:[#allocation8 + $0x60] sm:$0xff]
    %v131 = vld [vmem:[#allocation8 + $0x68] sm:$0xff]
    %v132 = vld [vmem:[#allocation8 + $0x70] sm:$0xff]
    %v133 = vld [vmem:[#allocation8 + $0x78] sm:$0xff]
    %v134 = vld [vmem:[#allocation8 + $0x80] sm:$0xff]
    %v135 = vld [vmem:[#allocation8 + $0x88] sm:$0xff]
    %v136 = vld [vmem:[#allocation8 + $0x90] sm:$0xff]
    %v137 = vld [vmem:[#allocation8 + $0x98] sm:$0xff]
    %v138 = vld [vmem:[#allocation8 + $0xa0] sm:$0xff]
    %v139 = vld [vmem:[#allocation8 + $0xa8] sm:$0xff]
    %v140 = vld [vmem:[#allocation8 + $0xb0] sm:$0xff]
    %v141 = vld [vmem:[#allocation8 + $0xb8] sm:$0xff]
    %v142 = vld [vmem:[#allocation8 + $0xc0] sm:$0xff]
    %v143 = vld [vmem:[#allocation8 + $0xc8] sm:$0xff]
    %v144 = vld [vmem:[#allocation8 + $0xd0] sm:$0xff]
    %v145 = vld [vmem:[#allocation8 + $0xd8] sm:$0xff]
    %v146 = vld [vmem:[#allocation8 + $0xe0] sm:$0xff]
    %v147 = vld [vmem:[#allocation8 + $0xe8] sm:$0xff]
    %v148 = vld [vmem:[#allocation8 + $0xf0] sm:$0xff]
    %v149 = vld [vmem:[#allocation8 + $0xf8] sm:$0xff]
    %v150 = vld [vmem:[%s4] sm:$0x3]
    %v152 = vlaneseq
    %v153 = vshrl.u32 %v152, 7
    %v154 = vsub.s32 0, %v153
    %v155 = vrot.slane %v150, %v154
    %v156 = vlaneseq
    %v157 = vshrl.u32 %v156, 7
    %v158 = vsub.s32 1, %v157
    %v159 = vrot.slane %v150, %v158
    %v164 = vunpack.c.l.b16 %v116
    %v165 = vunpack.c.h.b16 %v116
    %v166 = vunpack.c.l.b16 %v117
    %v167 = vunpack.c.h.b16 %v117
    %v168 = vpack.c.b16 %v166, %v164
    %v169 = vpack.c.b16 %v167, %v165
    %v204 = vunpack.c.l.b16 %v118
    %v205 = vunpack.c.h.b16 %v118
    %v206 = vunpack.c.l.b16 %v119
    %v207 = vunpack.c.h.b16 %v119
    %v208 = vunpack.c.l.b16 %v120
    %v209 = vunpack.c.h.b16 %v120
    %v210 = vunpack.c.l.b16 %v121
    %v211 = vunpack.c.h.b16 %v121
    %v212 = vunpack.c.l.b16 %v122
    %v213 = vunpack.c.h.b16 %v122
    %v214 = vunpack.c.l.b16 %v123
    %v215 = vunpack.c.h.b16 %v123
    %v216 = vunpack.c.l.b16 %v124
    %v217 = vunpack.c.h.b16 %v124
    %v218 = vunpack.c.l.b16 %v125
    %v219 = vunpack.c.h.b16 %v125
    %v220 = vunpack.c.l.b16 %v126
    %v221 = vunpack.c.h.b16 %v126
    %v222 = vunpack.c.l.b16 %v127
    %v223 = vunpack.c.h.b16 %v127
    %v224 = vunpack.c.l.b16 %v128
    %v225 = vunpack.c.h.b16 %v128
    %v226 = vunpack.c.l.b16 %v129
    %v227 = vunpack.c.h.b16 %v129
    %v228 = vunpack.c.l.b16 %v130
    %v229 = vunpack.c.h.b16 %v130
    %v230 = vunpack.c.l.b16 %v131
    %v231 = vunpack.c.h.b16 %v131
    %v232 = vunpack.c.l.b16 %v132
    %v233 = vunpack.c.h.b16 %v132
    %v234 = vunpack.c.l.b16 %v133
    %v235 = vunpack.c.h.b16 %v133
    %v236 = vunpack.c.l.b16 %v134
    %v237 = vunpack.c.h.b16 %v134
    %v238 = vunpack.c.l.b16 %v135
    %v239 = vunpack.c.h.b16 %v135
    %v240 = vunpack.c.l.b16 %v136
    %v241 = vunpack.c.h.b16 %v136
    %v242 = vunpack.c.l.b16 %v137
    %v243 = vunpack.c.h.b16 %v137
    %v244 = vunpack.c.l.b16 %v138
    %v245 = vunpack.c.h.b16 %v138
    %v246 = vunpack.c.l.b16 %v139
    %v247 = vunpack.c.h.b16 %v139
    %v248 = vunpack.c.l.b16 %v140
    %v249 = vunpack.c.h.b16 %v140
    %v250 = vunpack.c.l.b16 %v141
    %v251 = vunpack.c.h.b16 %v141
    %v252 = vunpack.c.l.b16 %v142
    %v253 = vunpack.c.h.b16 %v142
    %v254 = vunpack.c.l.b16 %v143
    %v255 = vunpack.c.h.b16 %v143
    %v256 = vunpack.c.l.b16 %v144
    %v257 = vunpack.c.h.b16 %v144
    %v258 = vunpack.c.l.b16 %v145
    %v259 = vunpack.c.h.b16 %v145
    %v260 = vunpack.c.l.b16 %v146
    %v261 = vunpack.c.h.b16 %v146
    %v262 = vunpack.c.l.b16 %v147
    %v263 = vunpack.c.h.b16 %v147
    %v264 = vunpack.c.l.b16 %v148
    %v265 = vunpack.c.h.b16 %v148
    %v266 = vunpack.c.l.b16 %v149
    %v267 = vunpack.c.h.b16 %v149
    %v268 = vpack.c.b16 %v206, %v204
    %v269 = vpack.c.b16 %v207, %v205
    %v270 = vpack.c.b16 %v210, %v208
    %v271 = vpack.c.b16 %v211, %v209
    %v272 = vpack.c.b16 %v214, %v212
    %v273 = vpack.c.b16 %v215, %v213
    %v274 = vpack.c.b16 %v218, %v216
    %v275 = vpack.c.b16 %v219, %v217
    %v276 = vpack.c.b16 %v222, %v220
    %v277 = vpack.c.b16 %v223, %v221
    %v278 = vpack.c.b16 %v226, %v224
    %v279 = vpack.c.b16 %v227, %v225
    %v280 = vpack.c.b16 %v230, %v228
    %v281 = vpack.c.b16 %v231, %v229
    %v282 = vpack.c.b16 %v234, %v232
    %v283 = vpack.c.b16 %v235, %v233
    %v284 = vpack.c.b16 %v238, %v236
    %v285 = vpack.c.b16 %v239, %v237
    %v286 = vpack.c.b16 %v242, %v240
    %v287 = vpack.c.b16 %v243, %v241
    %v288 = vpack.c.b16 %v246, %v244
    %v289 = vpack.c.b16 %v247, %v245
    %v290 = vpack.c.b16 %v250, %v248
    %v291 = vpack.c.b16 %v251, %v249
    %v292 = vpack.c.b16 %v254, %v252
    %v293 = vpack.c.b16 %v255, %v253
    %v294 = vpack.c.b16 %v258, %v256
    %v295 = vpack.c.b16 %v259, %v257
    %v296 = vpack.c.b16 %v262, %v260
    %v297 = vpack.c.b16 %v263, %v261
    %v298 = vpack.c.b16 %v266, %v264
    %v299 = vpack.c.b16 %v267, %v265
    %332 = vmatprep.subr.bf16.mxu0 %v283
    %333 = vmatpush1.bf16.msra.mxu0 %v282
    %334 = vmatprep.subr.bf16.mxu0 %v281
    %335 = vmatpush1.bf16.msra.mxu0 %v280
    %336 = vmatprep.subr.bf16.mxu0 %v279
    %337 = vmatpush1.bf16.msra.mxu0 %v278
    %338 = vmatprep.subr.bf16.mxu0 %v277
    %339 = vmatpush1.bf16.msra.mxu0 %v276
    %340 = vmatprep.subr.bf16.mxu0 %v275
    %341 = vmatpush1.bf16.msra.mxu0 %v274
    %342 = vmatprep.subr.bf16.mxu0 %v273
    %343 = vmatpush1.bf16.msra.mxu0 %v272
    %344 = vmatprep.subr.bf16.mxu0 %v271
    %345 = vmatpush1.bf16.msra.mxu0 %v270
    %346 = vmatprep.subr.bf16.mxu0 %v269
    %347 = vmatpush1.bf16.msra.mxu0 %v268
    %348 = vmatprep.subr.bf16.mxu0 %v299
    %349 = vmatpush2.bf16.msra.mxu0 %v298
    %350 = vmatprep.subr.bf16.mxu0 %v297
    %351 = vmatpush2.bf16.msra.mxu0 %v296
    %352 = vmatprep.subr.bf16.mxu0 %v295
    %353 = vmatpush2.bf16.msra.mxu0 %v294
    %354 = vmatprep.subr.bf16.mxu0 %v293
    %355 = vmatpush2.bf16.msra.mxu0 %v292
    %356 = vmatprep.subr.bf16.mxu0 %v291
    %357 = vmatpush2.bf16.msra.mxu0 %v290
    %358 = vmatprep.subr.bf16.mxu0 %v289
    %359 = vmatpush2.bf16.msra.mxu0 %v288
    %360 = vmatprep.subr.bf16.mxu0 %v287
    %361 = vmatpush2.bf16.msra.mxu0 %v286
    %362 = vmatprep.subr.bf16.mxu0 %v285
    %363 = vmatpush2.bf16.msra.mxu0 %v284
    %364 = vmatprep.mubr.bf16.mxu0 %v169
    %365 = vmatmul.mubr.bf16.gmra.mxu0 %v168
    %v366 = vpop.f32.mrf.mxu0
    %v367 = vadd.f32 %v155, %v366
    %v368 = vpop.f32.mrf.mxu0
    %v369 = vadd.f32 %v159, %v368
    %v370 = vpop.f32.mrf.mxu0
    %v371 = vadd.f32 %v155, %v370
    %v372 = vpop.f32.mrf.mxu0
    %v373 = vadd.f32 %v159, %v372
    %374 = vdwg.mxu0
    %v375 = vld [vmem:[#allocation7] sm:$0xff]
    %v376 = vld [vmem:[#allocation7 + $0x8] sm:$0xff]
    %v377 = vmul.f32 %v369, 0.5
    %v378 = vmul.f32 %v373, 0.5
    %v379 = vmul.f32 %v377, 1.442695
    %v380 = vpow.pop %v379
    %v381 = vmul.f32 %v378, 1.442695
    %v382 = vpow.pop %v381
    %v383 = vmul.f32 %v375, %v380
    %v384 = vmul.f32 %v376, %v382
    %v385 = vadd.f32 %v383, %v367
    %v386 = vadd.f32 %v384, %v371
    %v387 = vpack.c.bf16 %v386, %v385
    %v388 = vld [vmem:[#allocation10] sm:$0xff]
    %v389 = vld [vmem:[#allocation10 + $0x8] sm:$0xff]
    %v390 = vld [vmem:[#allocation10 + $0x10] sm:$0xff]
    %v391 = vld [vmem:[#allocation10 + $0x18] sm:$0xff]
    %v392 = vld [vmem:[#allocation10 + $0x20] sm:$0xff]
    %v393 = vld [vmem:[#allocation10 + $0x28] sm:$0xff]
    %v394 = vld [vmem:[#allocation10 + $0x30] sm:$0xff]
    %v395 = vld [vmem:[#allocation10 + $0x38] sm:$0xff]
    %v396 = vld [vmem:[#allocation10 + $0x40] sm:$0xff]
    %v397 = vld [vmem:[#allocation10 + $0x48] sm:$0xff]
    %v398 = vld [vmem:[#allocation10 + $0x50] sm:$0xff]
    %v399 = vld [vmem:[#allocation10 + $0x58] sm:$0xff]
    %v400 = vld [vmem:[#allocation10 + $0x60] sm:$0xff]
    %v401 = vld [vmem:[#allocation10 + $0x68] sm:$0xff]
    %v402 = vld [vmem:[#allocation10 + $0x70] sm:$0xff]
    %v403 = vld [vmem:[#allocation10 + $0x78] sm:$0xff]
    %v404 = vld [vmem:[#allocation5] sm:$0xf]
    %v405 = vld [vmem:[#allocation5 + $0x4] sm:$0xf]
    %v406 = vld [vmem:[#allocation11] sm:$0xff]
    %v407 = vld [vmem:[#allocation11 + $0x8] sm:$0xff]
    %v408 = vld [vmem:[#allocation11 + $0x10] sm:$0xff]
    %v409 = vld [vmem:[#allocation11 + $0x18] sm:$0xff]
    %v410 = vld [vmem:[#allocation11 + $0x20] sm:$0xff]
    %v411 = vld [vmem:[#allocation11 + $0x28] sm:$0xff]
    %v412 = vld [vmem:[#allocation11 + $0x30] sm:$0xff]
    %v413 = vld [vmem:[#allocation11 + $0x38] sm:$0xff]
    %v414 = vld [vmem:[#allocation11 + $0x40] sm:$0xff]
    %v415 = vld [vmem:[#allocation11 + $0x48] sm:$0xff]
    %v416 = vld [vmem:[#allocation11 + $0x50] sm:$0xff]
    %v417 = vld [vmem:[#allocation11 + $0x58] sm:$0xff]
    %v418 = vld [vmem:[#allocation11 + $0x60] sm:$0xff]
    %v419 = vld [vmem:[#allocation11 + $0x68] sm:$0xff]
    %v420 = vld [vmem:[#allocation11 + $0x70] sm:$0xff]
    %v421 = vld [vmem:[#allocation11 + $0x78] sm:$0xff]
    %v424 = vunpack.c.l.b16 %v404
    %v425 = vunpack.c.l.b16 %v405
    %v426 = vpack.c.b16 %v425, %v424
    %v444 = vunpack.c.l.b16 %v406
    %v445 = vunpack.c.h.b16 %v406
    %v446 = vunpack.c.l.b16 %v407
    %v447 = vunpack.c.h.b16 %v407
    %v448 = vunpack.c.l.b16 %v408
    %v449 = vunpack.c.h.b16 %v408
    %v450 = vunpack.c.l.b16 %v409
    %v451 = vunpack.c.h.b16 %v409
    %v452 = vunpack.c.l.b16 %v410
    %v453 = vunpack.c.h.b16 %v410
    %v454 = vunpack.c.l.b16 %v411
    %v455 = vunpack.c.h.b16 %v411
    %v456 = vunpack.c.l.b16 %v412
    %v457 = vunpack.c.h.b16 %v412
    %v458 = vunpack.c.l.b16 %v413
    %v459 = vunpack.c.h.b16 %v413
    %v460 = vunpack.c.l.b16 %v414
    %v461 = vunpack.c.h.b16 %v414
    %v462 = vunpack.c.l.b16 %v415
    %v463 = vunpack.c.h.b16 %v415
    %v464 = vunpack.c.l.b16 %v416
    %v465 = vunpack.c.h.b16 %v416
    %v466 = vunpack.c.l.b16 %v417
    %v467 = vunpack.c.h.b16 %v417
    %v468 = vunpack.c.l.b16 %v418
    %v469 = vunpack.c.h.b16 %v418
    %v470 = vunpack.c.l.b16 %v419
    %v471 = vunpack.c.h.b16 %v419
    %v472 = vunpack.c.l.b16 %v420
    %v473 = vunpack.c.h.b16 %v420
    %v474 = vunpack.c.l.b16 %v421
    %v475 = vunpack.c.h.b16 %v421
    %v476 = vpack.c.b16 %v446, %v444
    %v477 = vpack.c.b16 %v447, %v445
    %v478 = vpack.c.b16 %v450, %v448
    %v479 = vpack.c.b16 %v451, %v449
    %v480 = vpack.c.b16 %v454, %v452
    %v481 = vpack.c.b16 %v455, %v453
    %v482 = vpack.c.b16 %v458, %v456
    %v483 = vpack.c.b16 %v459, %v457
    %v484 = vpack.c.b16 %v462, %v460
    %v485 = vpack.c.b16 %v463, %v461
    %v486 = vpack.c.b16 %v466, %v464
    %v487 = vpack.c.b16 %v467, %v465
    %v488 = vpack.c.b16 %v470, %v468
    %v489 = vpack.c.b16 %v471, %v469
    %v490 = vpack.c.b16 %v474, %v472
    %v491 = vpack.c.b16 %v475, %v473
    %508 = vmatprep.subr.bf16.mxu0 %v491
    %509 = vmatpush1.bf16.msra.mxu0 %v490
    %510 = vmatprep.subr.bf16.mxu0 %v489
    %511 = vmatpush1.bf16.msra.mxu0 %v488
    %512 = vmatprep.subr.bf16.mxu0 %v487
    %513 = vmatpush1.bf16.msra.mxu0 %v486
    %514 = vmatprep.subr.bf16.mxu0 %v485
    %515 = vmatpush1.bf16.msra.mxu0 %v484
    %516 = vmatprep.subr.bf16.mxu0 %v483
    %517 = vmatpush1.bf16.msra.mxu0 %v482
    %518 = vmatprep.subr.bf16.mxu0 %v481
    %519 = vmatpush1.bf16.msra.mxu0 %v480
    %520 = vmatprep.subr.bf16.mxu0 %v479
    %521 = vmatpush1.bf16.msra.mxu0 %v478
    %522 = vmatprep.subr.bf16.mxu0 %v477
    %523 = vmatpush1.bf16.msra.mxu0 %v476
    %524 = vmatprep.subr.bf16.mxu0 0
    %525 = vmatpush2.bf16.msra.mxu0 0
    %526 = vmatprep.subr.bf16.mxu0 0
    %527 = vmatpush2.bf16.msra.mxu0 0
    %528 = vmatprep.subr.bf16.mxu0 0
    %529 = vmatpush2.bf16.msra.mxu0 0
    %530 = vmatprep.subr.bf16.mxu0 0
    %531 = vmatpush2.bf16.msra.mxu0 0
    %532 = vmatprep.subr.bf16.mxu0 0
    %533 = vmatpush2.bf16.msra.mxu0 0
    %534 = vmatprep.subr.bf16.mxu0 0
    %535 = vmatpush2.bf16.msra.mxu0 0
    %536 = vmatprep.subr.bf16.mxu0 0
    %537 = vmatpush2.bf16.msra.mxu0 0
    %538 = vmatprep.subr.bf16.mxu0 0
    %539 = vmatpush2.bf16.msra.mxu0 0
    %540 = vmatprep.mubr.bf16.mxu0 0
    %541 = vmatmul.mubr.bf16.gmra.mxu0 %v426
    %v542 = vpop.f32.mrf.mxu0
    %v543 = vadd.f32 0.0, %v542
    %v544 = vpop.f32.mrf.mxu0
    %v545 = vadd.f32 0.0, %v544
    %v546 = vpop.f32.mrf.mxu0
    %v547 = vadd.f32 0.0, %v546
    %v548 = vpop.f32.mrf.mxu0
    %v549 = vadd.f32 0.0, %v548
    %550 = vdwg.mxu0
    %v567 = vunpack.c.l.b16 %v388
    %v568 = vunpack.c.h.b16 %v388
    %v569 = vunpack.c.l.b16 %v389
    %v570 = vunpack.c.h.b16 %v389
    %v571 = vunpack.c.l.b16 %v390
    %v572 = vunpack.c.h.b16 %v390
    %v573 = vunpack.c.l.b16 %v391
    %v574 = vunpack.c.h.b16 %v391
    %v575 = vunpack.c.l.b16 %v392
    %v576 = vunpack.c.h.b16 %v392
    %v577 = vunpack.c.l.b16 %v393
    %v578 = vunpack.c.h.b16 %v393
    %v579 = vunpack.c.l.b16 %v394
    %v580 = vunpack.c.h.b16 %v394
    %v581 = vunpack.c.l.b16 %v395
    %v582 = vunpack.c.h.b16 %v395
    %v583 = vunpack.c.l.b16 %v396
    %v584 = vunpack.c.h.b16 %v396
    %v585 = vunpack.c.l.b16 %v397
    %v586 = vunpack.c.h.b16 %v397
    %v587 = vunpack.c.l.b16 %v398
    %v588 = vunpack.c.h.b16 %v398
    %v589 = vunpack.c.l.b16 %v399
    %v590 = vunpack.c.h.b16 %v399
    %v591 = vunpack.c.l.b16 %v400
    %v592 = vunpack.c.h.b16 %v400
    %v593 = vunpack.c.l.b16 %v401
    %v594 = vunpack.c.h.b16 %v401
    %v595 = vunpack.c.l.b16 %v402
    %v596 = vunpack.c.h.b16 %v402
    %v597 = vunpack.c.l.b16 %v403
    %v598 = vunpack.c.h.b16 %v403
    %v599 = vpack.c.b16 %v569, %v567
    %v600 = vpack.c.b16 %v570, %v568
    %v601 = vpack.c.b16 %v573, %v571
    %v602 = vpack.c.b16 %v574, %v572
    %v603 = vpack.c.b16 %v577, %v575
    %v604 = vpack.c.b16 %v578, %v576
    %v605 = vpack.c.b16 %v581, %v579
    %v606 = vpack.c.b16 %v582, %v580
    %v607 = vpack.c.b16 %v585, %v583
    %v608 = vpack.c.b16 %v586, %v584
    %v609 = vpack.c.b16 %v589, %v587
    %v610 = vpack.c.b16 %v590, %v588
    %v611 = vpack.c.b16 %v593, %v591
    %v612 = vpack.c.b16 %v594, %v592
    %v613 = vpack.c.b16 %v597, %v595
    %v614 = vpack.c.b16 %v598, %v596
    %631 = vmatprep.subr.bf16.mxu0 %v614
    %632 = vmatpush1.bf16.msra.mxu0 %v613
    %633 = vmatprep.subr.bf16.mxu0 %v612
    %634 = vmatpush1.bf16.msra.mxu0 %v611
    %635 = vmatprep.subr.bf16.mxu0 %v610
    %636 = vmatpush1.bf16.msra.mxu0 %v609
    %637 = vmatprep.subr.bf16.mxu0 %v608
    %638 = vmatpush1.bf16.msra.mxu0 %v607
    %639 = vmatprep.subr.bf16.mxu0 %v606
    %640 = vmatpush1.bf16.msra.mxu0 %v605
    %641 = vmatprep.subr.bf16.mxu0 %v604
    %642 = vmatpush1.bf16.msra.mxu0 %v603
    %643 = vmatprep.subr.bf16.mxu0 %v602
    %644 = vmatpush1.bf16.msra.mxu0 %v601
    %645 = vmatprep.subr.bf16.mxu0 %v600
    %646 = vmatpush1.bf16.msra.mxu0 %v599
    %647 = vmatprep.subr.bf16.mxu0 0
    %648 = vmatpush2.bf16.msra.mxu0 0
    %649 = vmatprep.subr.bf16.mxu0 0
    %650 = vmatpush2.bf16.msra.mxu0 0
    %651 = vmatprep.subr.bf16.mxu0 0
    %652 = vmatpush2.bf16.msra.mxu0 0
    %653 = vmatprep.subr.bf16.mxu0 0
    %654 = vmatpush2.bf16.msra.mxu0 0
    %655 = vmatprep.subr.bf16.mxu0 0
    %656 = vmatpush2.bf16.msra.mxu0 0
    %657 = vmatprep.subr.bf16.mxu0 0
    %658 = vmatpush2.bf16.msra.mxu0 0
    %659 = vmatprep.subr.bf16.mxu0 0
    %660 = vmatpush2.bf16.msra.mxu0 0
    %661 = vmatprep.subr.bf16.mxu0 0
    %662 = vmatpush2.bf16.msra.mxu0 0
    %663 = vmatprep.mubr.bf16.mxu0 0
    %664 = vmatmul.mubr.bf16.gmra.mxu0 %v387
    %v665 = vpop.f32.mrf.mxu0
    %v666 = vadd.f32 %v543, %v665
    %v667 = vpop.f32.mrf.mxu0
    %v668 = vadd.f32 %v545, %v667
    %v669 = vpop.f32.mrf.mxu0
    %v670 = vadd.f32 %v547, %v669
    %v671 = vpop.f32.mrf.mxu0
    %v672 = vadd.f32 %v549, %v671
    %673 = vdwg.mxu0
    %v674 = vld [vmem:[%s7] sm:$0x3]
    %v676 = vlaneseq
    %v677 = vshrl.u32 %v676, 7
    %v678 = vsub.s32 0, %v677
    %v679 = vrot.slane %v674, %v678
    %v680 = vlaneseq
    %v681 = vshrl.u32 %v680, 7
    %v682 = vsub.s32 1, %v681
    %v683 = vrot.slane %v674, %v682
    %v686 = vadd.f32 %v666, %v679
    %v687 = vadd.f32 %v668, %v683
    %v688 = vadd.f32 %v670, %v679
    %v689 = vadd.f32 %v672, %v683
    %690 = vst [vmem:[#allocation13] sm:$0xff] %v686
    %691 = vst [vmem:[#allocation13 + $0x8] sm:$0xff] %v687
    %692 = vst [vmem:[#allocation13 + $0x10] sm:$0xff] %v688
    %693 = vst [vmem:[#allocation13 + $0x18] sm:$0xff] %v689
    %694 = vst [vmem:[#allocation14] sm:$0xff] %v385
    %695 = vst [vmem:[#allocation14 + $0x18] sm:$0xff] %v386
    %696 = vst [vmem:[#allocation14 + $0x8] sm:$0xff] %v367
    %697 = vst [vmem:[#allocation14 + $0x20] sm:$0xff] %v371
    %698 = vst [vmem:[#allocation14 + $0x10] sm:$0xff] %v369
    %699 = vst [vmem:[#allocation14 + $0x28] sm:$0xff] %v373
    // Predicated region
    $region58: #{tpu_custom_call.1} parent=1 // pred_check
      _
    $region59: #{tpu_custom_call.1} parent=1 // pred_check_branch
      %701 = sbr.rel (0) target = $region61
    $region60: #{tpu_custom_call.1} parent=1 // pred_region
      %s703 = ssub.s32 512, 512
      %704 = vsyncadd [#allocation4], %s703
      %s705 = sshll.u32 [#allocation13], 4
      %s706 = int_to_ptr.vmem [resolvable:$true] %s705
      %711 = dma.vmem_to_hbm [thread:$0]  %s706, 512, %s8, [#allocation4], 256, 256, 16
    $region61: #{tpu_custom_call.1} parent=1 // pred_fallthru
      _
    // Predicated region
    $region62: #{tpu_custom_call.1} parent=1 // pred_check
      _
    $region63: #{tpu_custom_call.1} parent=1 // pred_check_branch
      %713 = sbr.rel (0) target = $region65
    $region64: #{tpu_custom_call.1} parent=1 // pred_region
      %s715 = ssub.s32 768, 768
      %716 = vsyncadd [#allocation15], %s715
      %s717 = sshll.u32 [#allocation14], 4
      %s718 = int_to_ptr.vmem [resolvable:$true] %s717
      %723 = dma.vmem_to_hbm [thread:$0]  %s718, 768, %s9, [#allocation15], 384, 384, 24
    $region65: #{tpu_custom_call.1} parent=1 // pred_fallthru
      _
    // Predicated region
    $region66: #{tpu_custom_call.1} parent=1 // pred_check
      _
    $region67: #{tpu_custom_call.1} parent=1 // pred_check_branch
      %725 = sbr.rel (0) target = $region69
    $region68: #{tpu_custom_call.1} parent=1 // pred_region
      %726 = dma.done [#allocation4], 512
    $region69: #{tpu_custom_call.1} parent=1 // pred_fallthru
      _
    // Predicated region
    $region70: #{tpu_custom_call.1} parent=1 // pred_check
      _
    $region71: #{tpu_custom_call.1} parent=1 // pred_check_branch
      %728 = sbr.rel (0) target = $region73
    $region72: #{tpu_custom_call.1} parent=1 // pred_region
      %729 = dma.done [#allocation15], 768
    $region73: #{tpu_custom_call.1} parent=1 // pred_fallthru
      _
    %730 = vsyncpa [#allocation3], 1
    %731 = vsyncpa [#allocation6], 1
    %732 = vsyncpa [#allocation9], 1
    %733 = vsyncpa [#allocation12], 1
    %734 = vsyncpa [#allocation4], 1
    %735 = vsyncpa [#allocation15], 1

</llo_original>
